<compile_context>
chip_gen: v5e
topology: v5e:2x2
jax: 0.10.0
libtpu: 0.0.40
codegen_flags: <defaults>
</compile_context>

<pallas_src>
import jax
import jax.numpy as jnp
from jax.experimental import pallas as pl
from jax.experimental.pallas import tpu as pltpu


def _make_flatten_dma_kernel(chunks):
    """Build a kernel that copies (b, f) HBM->HBM via len(chunks) DMAs.

    `chunks` is a static list of (row_start, row_size) tuples covering [0, b).
    All starts/sizes are Python ints, so every `.at[pl.ds(...)]` slice below
    is a zero-cost static ref-view.
    """
    n = len(chunks)

    def kernel(x_ref, o_ref, sem):
        copies = []
        for k, (start, size) in enumerate(chunks):
            copies.append(
                pltpu.make_async_copy(
                    x_ref.at[pl.ds(start, size)],
                    o_ref.at[pl.ds(start, size)],
                    sem.at[k],
                )
            )
        # Start all DMAs first (in-flight concurrently), then wait all.
        for cp in copies:
            cp.start()
        for cp in copies:
            cp.wait()

    return kernel, n


def flatten(
    feat: jax.Array,
    *,
    force_copy: bool = False,
    max_dmas: int = 4,
    min_bytes_per_dma: int = 4 << 20,  # only split when chunks are >= 4 MiB
) -> jax.Array:
    """Equivalent of PyTorch `feat.view(feat.size(0), -1)`.

    Works for any rank >= 1; trailing dims are collapsed in row-major order
    (identical to torch .view on a contiguous tensor).

    force_copy=False (default): metadata-only reshape, zero data movement.
        NOTE: if the only reason you want a contiguous (b, f) buffer is to
        feed a matmul/classifier head, fuse the flatten into that consumer
        kernel's BlockSpec/index_map instead -- that removes the 2x-bytes
        HBM round trip entirely.
    force_copy=True: materialize a contiguous copy via HBM->HBM DMA(s).
    """
    b = feat.shape[0]
    f = 1
    for d in feat.shape[1:]:
        f *= d

    # Fast path: flatten of a contiguous array is free (pure view/reshape).
    if not force_copy:
        return feat.reshape(b, f)

    itemsize = jnp.dtype(feat.dtype).itemsize
    total_bytes = b * f * itemsize

    # Degenerate-shape guard: empty or tiny tensors are cheaper via plain XLA
    # (Pallas custom-call launch overhead ~us; avoids zero-length DMA edge case).
    if b == 0 or f == 0 or total_bytes < 1024:
        return feat.reshape(b, f)

    # Choose number of concurrent DMAs (static). Keep K small; only split when
    # each chunk is still large enough to amortize descriptor-issue latency.
    num_dmas = 1
    if b >= 2 and max_dmas > 1:
        num_dmas = min(max_dmas, b, max(1, total_bytes // max(1, min_bytes_per_dma)))
    num_dmas = max(1, int(num_dmas))

    # Static, exhaustive row partition (handles b not divisible by num_dmas).
    chunks = []
    base, rem, start = b // num_dmas, b % num_dmas, 0
    for k in range(num_dmas):
        size = base + (1 if k < rem else 0)
        if size > 0:
            chunks.append((start, size))
        start += size

    kernel, n_sems = _make_flatten_dma_kernel(chunks)

    # Physical-copy path: HBM->HBM DMA(s), operands left in place (pl.ANY).
    x2d = feat.reshape(b, f)  # bitcast on a contiguous array, no HBM traffic
    return pl.pallas_call(
        kernel,
        out_shape=jax.ShapeDtypeStruct((b, f), feat.dtype),
        in_specs=[pl.BlockSpec(memory_space=pl.ANY)],
        out_specs=pl.BlockSpec(memory_space=pl.ANY),
        scratch_shapes=[pltpu.SemaphoreType.DMA((n_sems,))],
        cost_estimate=pl.CostEstimate(
            flops=0,
            transcendentals=0,
            bytes_accessed=2 * total_bytes,  # read + write: pure HBM-BW bound
        ),
    )(x2d)


if __name__ == "__main__":
    key = jax.random.PRNGKey(0)
    # Small NCHW input consistent with a conv-feature map: (B=2, C=4, H=16, W=16)
    x = jax.random.normal(key, (2, 4, 16, 16), dtype=jnp.float32)

    y_ref = x.reshape(x.shape[0], -1)

    # 1) Default (free, metadata-only) path.
    y_fast = jax.block_until_ready(flatten(x))
    assert y_fast.shape == (2, 4 * 16 * 16), y_fast.shape
    assert jnp.array_equal(y_fast, y_ref), "fast-path flatten mismatch"

    # 2) Pallas HBM->HBM single-DMA copy path (exercises the kernel).
    y_copy = jax.block_until_ready(flatten(x, force_copy=True))
    assert y_copy.shape == (2, 4 * 16 * 16), y_copy.shape
    assert jnp.array_equal(y_copy, y_ref), "DMA-copy flatten mismatch"

    # 3) Multi-DMA variant (lower split threshold so 2 concurrent DMAs fire
    #    even on this small test tensor) -- exercises the K>1 kernel path.
    y_multi = jax.block_until_ready(
        flatten(x, force_copy=True, max_dmas=4, min_bytes_per_dma=1024)
    )
    assert y_multi.shape == (2, 4 * 16 * 16), y_multi.shape
    assert jnp.array_equal(y_multi, y_ref), "multi-DMA flatten mismatch"

    print("KERNEL_OK")
</pallas_src>

<mosaic_0001>
module attributes {stable_mosaic.version = 11 : i64} {
  func.func @kernel(%arg0: memref<2x1024xf32, #tpu.memory_space<any>>, %arg1: memref<2x1024xf32, #tpu.memory_space<any>>, %arg2: memref<1x!tpu.dma_semaphore, #tpu.memory_space<semaphore_mem>>) attributes {dimension_semantics = [], scalar_prefetch = 0 : i64, scratch_operands = 1 : i64, tpu.core_type = #tpu.core_type<tc>} {
    %c0_i32 = arith.constant 0 : i32
    %c0_i32_0 = arith.constant 0 : i32
    %c0_i32_1 = arith.constant 0 : i32
    %0 = tpu.memref_slice %arg0[%c0_i32_0, %c0_i32_1] : memref<2x1024xf32, #tpu.memory_space<any>> -> memref<2x1024xf32, #tpu.memory_space<any>>
    %c0_i32_2 = arith.constant 0 : i32
    %c0_i32_3 = arith.constant 0 : i32
    %1 = tpu.memref_slice %arg1[%c0_i32_2, %c0_i32_3] : memref<2x1024xf32, #tpu.memory_space<any>> -> memref<2x1024xf32, #tpu.memory_space<any>>
    %2 = tpu.memref_slice %arg2[%c0_i32] : memref<1x!tpu.dma_semaphore, #tpu.memory_space<semaphore_mem>> -> memref<1x!tpu.dma_semaphore, #tpu.memory_space<semaphore_mem>>
    %3 = tpu.memref_squeeze %2 : memref<1x!tpu.dma_semaphore, #tpu.memory_space<semaphore_mem>> -> memref<!tpu.dma_semaphore, #tpu.memory_space<semaphore_mem>>
    tpu.enqueue_dma source(%0 : memref<2x1024xf32, #tpu.memory_space<any>>) target(%1 : memref<2x1024xf32, #tpu.memory_space<any>>) target_semaphore(%3 : memref<!tpu.dma_semaphore, #tpu.memory_space<semaphore_mem>>)
    %c0_i32_4 = arith.constant 0 : i32
    %c0_i32_5 = arith.constant 0 : i32
    %c0_i32_6 = arith.constant 0 : i32
    %4 = tpu.memref_slice %arg0[%c0_i32_5, %c0_i32_6] : memref<2x1024xf32, #tpu.memory_space<any>> -> memref<2x1024xf32, #tpu.memory_space<any>>
    %c0_i32_7 = arith.constant 0 : i32
    %c0_i32_8 = arith.constant 0 : i32
    %5 = tpu.memref_slice %arg1[%c0_i32_7, %c0_i32_8] : memref<2x1024xf32, #tpu.memory_space<any>> -> memref<2x1024xf32, #tpu.memory_space<any>>
    %6 = tpu.memref_slice %arg2[%c0_i32_4] : memref<1x!tpu.dma_semaphore, #tpu.memory_space<semaphore_mem>> -> memref<1x!tpu.dma_semaphore, #tpu.memory_space<semaphore_mem>>
    %7 = tpu.memref_squeeze %6 : memref<1x!tpu.dma_semaphore, #tpu.memory_space<semaphore_mem>> -> memref<!tpu.dma_semaphore, #tpu.memory_space<semaphore_mem>>
    tpu.wait_dma2 semaphore(%7 : memref<!tpu.dma_semaphore, #tpu.memory_space<semaphore_mem>>) src(%4 : memref<2x1024xf32, #tpu.memory_space<any>>) dst(%5 : memref<2x1024xf32, #tpu.memory_space<any>>)
    return
  }
}

</mosaic_0001>

<llo_original>
// kernel: tpu_custom_call.1
$region0: #{tpu_custom_call.1}
  #allocation0 [shape = 'u32[]', space=smem, size = 0x4, offset = 0x4, fixed_abs, tag = 'smem constant byte address 0x4 - core index']
  #allocation1 [shape = 'u32[72,128]{1,0:T(1,128)}', space=vmem, size = 0x9000, scoped, tag = 'internal scratch']
  #allocation2 [shape = 's32[1]{0}', space=sflag, size = 0x4, scoped, tag = 'scratch operand']
  #allocation3 [shape = 's32[]', space=sflag, size = 0x4, offset = 0, fixed_abs, tag = 'sflag constant byte address 0x0 - dummy sync flag']
  #allocation4 [shape = 'u32[0]{0}', space=smem, size = 0, offset = 0, fixed_abs, tag = 'smem constant byte address 0x0 - null']
  %s0 = inlined_call_operand.hbm [shape: f32[2,1024], index: 0, kind: input, shape index: {}]
  %s1 = inlined_call_operand.hbm [shape: f32[2,1024], index: 1, kind: output, shape index: {}]
  %s2 = sld [smem:[#allocation0]]
  $region2: #{tpu_custom_call.1} parent=0
    _
  %s4 = ssub.s32 1, %s2
  %s5 = scalar_select 0, %s4, %s2
  %s7 = sshll.u32 1, 14
  %s8 = sxor.u32 4294967295, %s7
  %s10 = sshll.u32 %s0, 4
  %s11 = int_to_ptr.hbm [resolvable:$true] %s10
  %s12 = sshll.u32 %s1, 4
  %s13 = int_to_ptr.hbm [resolvable:$true] %s12
  %16 = dma.general %s11, 256, %s13, [#allocation2], [#allocation3], [#allocation4], 0, 0
  %s17 = smul.u32 2, 1
  %s18 = smul.u32 %s17, 8
  %s19 = sshll.u32 %s18, 4
  %20 = dma.done [#allocation2], %s19
  %21 = vsyncmov [#allocation2]
  %s22 = vpop.sfrf %21
  %p23 = scmp.eq.s32.totalorder %s22, 0
  %p24 = pneg %p23
  %26 = shalt.err (%p24)

</llo_original>
